<compile_context>
chip_gen: v7x
topology: tpu7x:2x2x1
jax: 0.10.0
libtpu: 0.0.40
codegen_flags: <defaults>
</compile_context>

<pallas_src>
import jax
import jax.numpy as jnp
from jax.experimental import pallas as pl
from jax.experimental.pallas import tpu as pltpu


def _scale_shift_kernel(tau_ref, b_ref, x_ref, o_ref):
    """o = x * tau + b  (tau, b are SMEM scalars)."""
    o_ref[...] = x_ref[...] * tau_ref[0, 0] + b_ref[0, 0]


def _choose_tiles(M, N, target_tile_bytes):
    """Pick (TM, TN) respecting the (8, 128) rule and a per-tile byte budget."""
    # Lane (last-dim) tile: full dim is always legal; cap very wide rows.
    if N % 128 == 0 and N > 4096:
        TN = 4096
    else:
        TN = N
    row_bytes = TN * 4  # f32
    tm_target = max(1, target_tile_bytes // row_bytes)
    if M <= 8:
        TM = M  # full-dim block (legal even if < 8)
    else:
        TM = max(8, (min(tm_target, M) // 8) * 8)  # multiple of 8
    return TM, TN


def _affine_2d(x2, tau2, b2, *, target_tile_bytes=2 << 20, donate=False):
    """Tiled Pallas call over a 2D f32 array: x2 * tau + b."""
    M, N = x2.shape
    TM, TN = _choose_tiles(M, N, target_tile_bytes)
    grid = (pl.cdiv(M, TM), pl.cdiv(N, TN))
    extra = {}
    if donate:
        # x2 is input index 2 (after the two SMEM scalars); reuse its buffer.
        extra["input_output_aliases"] = {2: 0}
    return pl.pallas_call(
        _scale_shift_kernel,
        out_shape=jax.ShapeDtypeStruct((M, N), jnp.float32),
        grid=grid,
        in_specs=[
            pl.BlockSpec((1, 1), lambda i, j: (0, 0), memory_space=pltpu.SMEM),
            pl.BlockSpec((1, 1), lambda i, j: (0, 0), memory_space=pltpu.SMEM),
            pl.BlockSpec((TM, TN), lambda i, j: (i, j)),
        ],
        out_specs=pl.BlockSpec((TM, TN), lambda i, j: (i, j)),
        compiler_params=pltpu.CompilerParams(
            dimension_semantics=("parallel", "parallel")
        ),
        **extra,
    )(tau2, b2, x2)


def apply_learnable_params(x, tau, b, *, donate_x=False):
    """Pallas-backed elementwise affine: x * tau + b (any shape / rank)."""
    orig_shape = x.shape
    orig_dtype = x.dtype
    tau2 = jnp.asarray(tau, jnp.float32).reshape(1, 1)
    b2 = jnp.asarray(b, jnp.float32).reshape(1, 1)
    xf = jnp.asarray(x, jnp.float32)

    if xf.ndim >= 2 and xf.shape[-1] % 128 == 0:
        # Already lane-aligned: collapse leading dims, tile directly.
        x2 = xf.reshape(-1, xf.shape[-1])
        out2 = _affine_2d(x2, tau2, b2, donate=donate_x)
        out = out2.reshape(orig_shape)
    else:
        # Repack to a lane-dense (rows, 512) slab so stores are full-lane vst
        # (DCD sim matrices are often B x B with B < 128).
        W = 512
        flat = xf.reshape(-1)
        total = flat.shape[0]
        pad = (-total) % (8 * W)
        if pad:
            flat = jnp.pad(flat, (0, pad))
        x2 = flat.reshape(-1, W)
        out2 = _affine_2d(x2, tau2, b2, donate=donate_x)
        out = out2.reshape(-1)[:total].reshape(orig_shape)
    return out.astype(orig_dtype)


class LearnableParams:
    """JAX mirror of the PyTorch module: holds two scalar parameters."""

    def __init__(self, init_tau=1.0, init_b=0.0):
        # Deterministic init, matching the PyTorch __init__ defaults.
        self.tau = jnp.asarray(init_tau, jnp.float32)
        self.b = jnp.asarray(init_b, jnp.float32)

    def forward(self):
        # Faithful to the PyTorch module: forward() is a no-op (returns None).
        return None

    def apply(self, x, *, donate_x=False):
        # The parameters' canonical downstream use in DCD (logit scale/shift),
        # implemented as a tiled Pallas TPU kernel.
        return apply_learnable_params(x, self.tau, self.b, donate_x=donate_x)


if __name__ == "__main__":
    key = jax.random.PRNGKey(0)
    k1, k2, k3 = jax.random.split(key, 3)

    # Non-default tau/b so the affine actually does something in the check.
    module = LearnableParams(init_tau=2.0, init_b=0.5)

    # Faithful forward (no-op).
    assert module.forward() is None

    cases = [
        # Small B x B similarity matrix (B < 128) -> lane-dense repack path.
        jax.random.normal(k1, (64, 64), dtype=jnp.float32),
        # Lane-aligned matrix -> direct tiled path (full-N, multiple of 128).
        jax.random.normal(k2, (128, 256), dtype=jnp.float32),
        # Odd, unaligned shape -> pad/repack path exercising edge handling.
        jax.random.normal(k3, (37, 200), dtype=jnp.float32),
    ]

    for x in cases:
        out = jax.block_until_ready(module.apply(x))
        ref = x * module.tau + module.b
        assert out.shape == ref.shape and out.dtype == ref.dtype
        assert jnp.allclose(out, ref, atol=1e-6, rtol=1e-6)

    print("KERNEL_OK")
</pallas_src>

<mosaic_0001>
module attributes {stable_mosaic.version = 11 : i64} {
  func.func @_scale_shift_kernel(%arg0: i32, %arg1: i32, %arg2: memref<1x1xf32, #tpu.memory_space<smem>>, %arg3: memref<1x1xf32, #tpu.memory_space<smem>>, %arg4: memref<8x512xf32, #tpu.memory_space<vmem>>, %arg5: memref<8x512xf32, #tpu.memory_space<vmem>>) attributes {dimension_semantics = [#tpu.dimension_semantics<parallel>, #tpu.dimension_semantics<parallel>], iteration_bounds = array<i64: 1, 1>, scalar_prefetch = 0 : i64, scratch_operands = 0 : i64, tpu.core_type = #tpu.core_type<tc>, window_params = [{transform_indices = @transform_0, window_bounds = array<i64: 1, 1>}, {transform_indices = @transform_1, window_bounds = array<i64: 1, 1>}, {transform_indices = @transform_2, window_bounds = array<i64: 8, 512>}, {transform_indices = @transform_3, window_bounds = array<i64: 8, 512>}]} {
    %c0 = arith.constant 0 : index
    %c0_0 = arith.constant 0 : index
    %0 = vector.load %arg4[%c0, %c0_0] : memref<8x512xf32, #tpu.memory_space<vmem>>, vector<8x512xf32>
    %c0_1 = arith.constant 0 : index
    %c0_2 = arith.constant 0 : index
    %1 = memref.load %arg2[%c0_1, %c0_2] : memref<1x1xf32, #tpu.memory_space<smem>>
    %2 = vector.broadcast %1 : f32 to vector<8x512xf32>
    %3 = arith.mulf %0, %2 : vector<8x512xf32>
    %c0_3 = arith.constant 0 : index
    %c0_4 = arith.constant 0 : index
    %4 = memref.load %arg3[%c0_3, %c0_4] : memref<1x1xf32, #tpu.memory_space<smem>>
    %5 = vector.broadcast %4 : f32 to vector<8x512xf32>
    %6 = arith.addf %3, %5 : vector<8x512xf32>
    %c0_5 = arith.constant 0 : index
    %c0_6 = arith.constant 0 : index
    %7 = vector.load %arg5[%c0_5, %c0_6] : memref<8x512xf32, #tpu.memory_space<vmem>>, vector<8x512xf32>
    tpu.vector_store %arg5[%c0_5, %c0_6], %6 {strides = array<i32>} : memref<8x512xf32, #tpu.memory_space<vmem>>, vector<8x512xf32>,
    return
  }
  func.func @transform_0(%arg0: i32, %arg1: i32) -> (i32, i32) {
    %c0_i32 = arith.constant 0 : i32
    %c0_i32_0 = arith.constant 0 : i32
    %c0_i32_1 = arith.constant 0 : i32
    return %c0_i32, %c0_i32_0 : i32, i32
  }
  func.func @transform_1(%arg0: i32, %arg1: i32) -> (i32, i32) {
    %c0_i32 = arith.constant 0 : i32
    %c0_i32_0 = arith.constant 0 : i32
    %c0_i32_1 = arith.constant 0 : i32
    return %c0_i32, %c0_i32_0 : i32, i32
  }
  func.func @transform_2(%arg0: i32, %arg1: i32) -> (i32, i32) {
    %c0_i32 = arith.constant 0 : i32
    return %arg0, %arg1 : i32, i32
  }
  func.func @transform_3(%arg0: i32, %arg1: i32) -> (i32, i32) {
    %c0_i32 = arith.constant 0 : i32
    return %arg0, %arg1 : i32, i32
  }
}

</mosaic_0001>

<llo_original>
// kernel: tpu_custom_call.1
$region0: #{tpu_custom_call.1}
  #allocation0 [shape = 'u32[]', space=smem, size = 0x4, offset = 0x4, fixed_abs, tag = 'smem constant byte address 0x4 - core index']
  #allocation1 [shape = 'u32[144,128]{1,0:T(1,128)}', space=vmem, size = 0x12000, scoped, tag = 'internal scratch']
  #allocation2 [shape = 'f32[1,1]{1,0:T(1,128)S(6)}', space=smem, size = 0x200, scoped, tag = 'scoped memory for tpu_custom_call.1']
  #allocation3 [shape = 'f32[1,1]{1,0:T(1,128)S(6)}', space=smem, size = 0x200, scoped, tag = 'scoped memory for tpu_custom_call.1']
  %s0 = inlined_call_operand.<no memory space> [shape: f32[1,1], index: 0, kind: input, shape index: {}]
  %s1 = inlined_call_operand.<no memory space> [shape: f32[1,1], index: 1, kind: input, shape index: {}]
  %s2 = inlined_call_operand.hbm [shape: f32[8,512], index: 2, kind: input, shape index: {}]
  %s3 = inlined_call_operand.hbm [shape: f32[8,512], index: 3, kind: output, shape index: {}]
  %s4 = sld [smem:[#allocation0]]
  $region26: #{tpu_custom_call.1} parent=0
    _
  %s6 = ssub.s32 1, %s4
  %s7 = scalar_select 0, %s6, %s4
  %8 = sst [smem:[#allocation2]] %s0
  %9 = sst [smem:[#allocation3]] %s1
  $region1: #{tpu_custom_call.1} parent=0
    #allocation4 [shape = 'u8[16384]{0}', space=vmem, size = 0x4000, scoped, tag = 'input window, operand 2, single buffered']
    #allocation5 [shape = 's32[1]{0}', space=sflag, size = 0x4, scoped, tag = 'scoped memory for tpu_custom_call.1']
    #allocation6 [shape = 's32[1]{0}', space=sflag, size = 0x4, scoped, tag = 'scoped memory for tpu_custom_call.1']
    #allocation7 [shape = 'u8[16384]{0}', space=vmem, size = 0x4000, scoped, tag = 'output window, operand 0, single buffered']
    %10 = vsyncpa [#allocation5], 0
    %11 = vsyncpa [#allocation6], 0
    // Predicated region
    $region2: #{tpu_custom_call.1} parent=1 // pred_check
      _
    $region3: #{tpu_custom_call.1} parent=1 // pred_check_branch
      %13 = sbr.rel (0) target = $region5
    $region4: #{tpu_custom_call.1} parent=1 // pred_region
      _
    $region5: #{tpu_custom_call.1} parent=1 // pred_fallthru
      _
    // Predicated region
    $region6: #{tpu_custom_call.1} parent=1 // pred_check
      _
    $region7: #{tpu_custom_call.1} parent=1 // pred_check_branch
      %15 = sbr.rel (0) target = $region9
    $region8: #{tpu_custom_call.1} parent=1 // pred_region
      _
    $region9: #{tpu_custom_call.1} parent=1 // pred_fallthru
      _
    // Predicated region
    $region10: #{tpu_custom_call.1} parent=1 // pred_check
      _
    $region11: #{tpu_custom_call.1} parent=1 // pred_check_branch
      %17 = sbr.rel (0) target = $region13
    $region12: #{tpu_custom_call.1} parent=1 // pred_region
      %s19 = ssub.s32 512, 512
      %20 = vsyncadd [#allocation5], %s19
      %s22 = sshll.u32 [#allocation4], 4
      %s23 = int_to_ptr.vmem [resolvable:$true] %s22
      %25 = dma.hbm_to_vmem [thread:$0]  %s2, 512, %s23, [#allocation5]
    $region13: #{tpu_custom_call.1} parent=1 // pred_fallthru
      _
    // Predicated region
    $region14: #{tpu_custom_call.1} parent=1 // pred_check
      _
    $region15: #{tpu_custom_call.1} parent=1 // pred_check_branch
      %27 = sbr.rel (0) target = $region17
    $region16: #{tpu_custom_call.1} parent=1 // pred_region
      %28 = dma.done [#allocation5], 512
    $region17: #{tpu_custom_call.1} parent=1 // pred_fallthru
      _
    %v29 = vld [vmem:[#allocation4] sm:$0xff]
    %v30 = vld [vmem:[#allocation4 + $0x8] sm:$0xff]
    %v31 = vld [vmem:[#allocation4 + $0x10] sm:$0xff]
    %v32 = vld [vmem:[#allocation4 + $0x18] sm:$0xff]
    %s33 = sld [smem:[#allocation2]]
    %v34 = vstv %s33
    %v35 = vmul.f32 %v29, %v34
    %v36 = vmul.f32 %v30, %v34
    %v37 = vmul.f32 %v31, %v34
    %v38 = vmul.f32 %v32, %v34
    %s39 = sld [smem:[#allocation3]]
    %v40 = vstv %s39
    %v41 = vadd.f32 %v35, %v40
    %v42 = vadd.f32 %v36, %v40
    %v43 = vadd.f32 %v37, %v40
    %v44 = vadd.f32 %v38, %v40
    %45 = vst [vmem:[#allocation7] sm:$0xff] %v41
    %46 = vst [vmem:[#allocation7 + $0x8] sm:$0xff] %v42
    %47 = vst [vmem:[#allocation7 + $0x10] sm:$0xff] %v43
    %48 = vst [vmem:[#allocation7 + $0x18] sm:$0xff] %v44
    // Predicated region
    $region18: #{tpu_custom_call.1} parent=1 // pred_check
      _
    $region19: #{tpu_custom_call.1} parent=1 // pred_check_branch
      %50 = sbr.rel (0) target = $region21
    $region20: #{tpu_custom_call.1} parent=1 // pred_region
      %s52 = ssub.s32 512, 512
      %53 = vsyncadd [#allocation6], %s52
      %s55 = sshll.u32 [#allocation7], 4
      %s56 = int_to_ptr.vmem [resolvable:$true] %s55
      %58 = dma.vmem_to_hbm [thread:$0]  %s56, 512, %s3, [#allocation6]
    $region21: #{tpu_custom_call.1} parent=1 // pred_fallthru
      _
    // Predicated region
    $region22: #{tpu_custom_call.1} parent=1 // pred_check
      _
    $region23: #{tpu_custom_call.1} parent=1 // pred_check_branch
      %60 = sbr.rel (0) target = $region25
    $region24: #{tpu_custom_call.1} parent=1 // pred_region
      %61 = dma.done [#allocation6], 512
    $region25: #{tpu_custom_call.1} parent=1 // pred_fallthru
      _
    %62 = vsyncpa [#allocation5], 1
    %63 = vsyncpa [#allocation6], 1

</llo_original>
